<compile_context>
chip_gen: v5e
topology: v5e:2x2
jax: 0.10.0
libtpu: 0.0.40
codegen_flags: <defaults>
</compile_context>

<pallas_src>
import functools

import jax
import jax.numpy as jnp
from jax.experimental import pallas as pl
from jax.experimental.pallas import tpu as pltpu

# Module hyper-parameters (scalars from LIF_neuron.__init__ / globals).
ALPHA = 0.9
BETA = 0.85
THR = 1.0
ADD_OFFSET_LIF = 1.0  # TODO(synk): ADD_OFFSET_LIF is an undefined global in the source; assumed 1.0.


def _round_up(x, m):
    return ((x + m - 1) // m) * m


def _lif_seq_kernel(x_ref, wcat_ref, off_ref, syn0_ref, mem0_ref, s0_ref,
                    spk_ref, syn_out_ref, mem_out_ref,
                    syn_sc, mem_sc, s_sc,
                    *, alpha, beta, thr):
    t = pl.program_id(0)

    @pl.when(t == 0)
    def _init():
        syn_sc[...] = syn0_ref[...]
        mem_sc[...] = mem0_ref[...]
        s_sc[...] = s0_ref[...]

    # Single fused MXU pass: h1 = [x | S] @ [[W]; [W_rec]]  (K = nin_pad + N).
    xs_cat = jnp.concatenate([x_ref[...], s_sc[...]], axis=-1)
    h1 = jnp.dot(xs_cat, wcat_ref[...], preferred_element_type=jnp.float32)
    h1 = h1 + off_ref[...]                      # offset pre-scaled & pre-broadcast

    new_syn = alpha * syn_sc[...] + h1
    new_mem = beta * mem_sc[...] + new_syn
    spike = (new_mem - thr) > 0.0               # SurrGradSpike.forward (step fn)
    out = jnp.where(spike, 1.0, 0.0).astype(jnp.float32)

    spk_ref[...] = out                          # lane-dense (bs, 128) store
    syn_sc[...] = new_syn
    mem_sc[...] = jnp.where(spike, 0.0, new_mem)   # membrane reset on spike
    s_sc[...] = out.astype(jnp.bfloat16)           # next-step recurrent input

    @pl.when(t == pl.num_programs(0) - 1)
    def _finalize():
        syn_out_ref[...] = syn_sc[...]
        mem_out_ref[...] = mem_sc[...]


def lif_forward_sequence(xs, weight, offset, weight_rec, syn0, mem0, S0,
                         *, alpha=ALPHA, beta=BETA, thr=THR,
                         add_offset=ADD_OFFSET_LIF):
    """Runs T consecutive LIF_neuron.forward steps inside one Pallas kernel.

    xs:         (T, bs, nb_inputs) float32
    weight:     (nb_inputs, nb_outputs) float32
    offset:     (nb_outputs,) float32
    weight_rec: (nb_outputs, nb_outputs) float32
    syn0/mem0/S0: (bs, nb_outputs) float32 initial LIF state
    Returns (spikes (T, bs, nb_outputs), syn_T, mem_T);  S_T == spikes[-1].
    """
    T, bs, nin = xs.shape
    nout = weight.shape[1]

    # Pad the input-feature dim to a lane multiple so the in-kernel [x | S]
    # concat lands on a 128-aligned lane offset (padded rows of W are zero).
    nin_pad = _round_up(nin, 128)
    xs_p = jnp.pad(xs, ((0, 0), (0, 0), (0, nin_pad - nin))).astype(jnp.bfloat16)
    w_p = jnp.pad(weight, ((0, nin_pad - nin), (0, 0)))
    w_cat = jnp.concatenate([w_p, weight_rec], axis=0).astype(jnp.bfloat16)

    off_b = jnp.broadcast_to(
        (offset * add_offset).astype(jnp.float32).reshape(1, nout), (bs, nout))
    s0_bf16 = S0.astype(jnp.bfloat16)

    kernel = functools.partial(_lif_seq_kernel, alpha=alpha, beta=beta, thr=thr)

    grid_spec = pltpu.PrefetchScalarGridSpec(
        num_scalar_prefetch=0,
        grid=(T,),
        in_specs=[
            pl.BlockSpec((None, bs, nin_pad), lambda t: (t, 0, 0)),   # x_t streamed
            pl.BlockSpec((nin_pad + nout, nout), lambda t: (0, 0)),   # W_cat resident
            pl.BlockSpec((bs, nout), lambda t: (0, 0)),               # offset resident
            pl.BlockSpec((bs, nout), lambda t: (0, 0)),               # syn0
            pl.BlockSpec((bs, nout), lambda t: (0, 0)),               # mem0
            pl.BlockSpec((bs, nout), lambda t: (0, 0)),               # S0
        ],
        out_specs=(
            pl.BlockSpec((None, bs, nout), lambda t: (t, 0, 0)),      # spikes
            pl.BlockSpec((bs, nout), lambda t: (0, 0)),               # syn_T
            pl.BlockSpec((bs, nout), lambda t: (0, 0)),               # mem_T
        ),
        scratch_shapes=[
            pltpu.VMEM((bs, nout), jnp.float32),    # syn carry
            pltpu.VMEM((bs, nout), jnp.float32),    # mem carry
            pltpu.VMEM((bs, nout), jnp.bfloat16),   # S carry (matmul dtype)
        ],
    )

    spikes, syn_T, mem_T = pl.pallas_call(
        kernel,
        grid_spec=grid_spec,
        out_shape=(
            jax.ShapeDtypeStruct((T, bs, nout), jnp.float32),
            jax.ShapeDtypeStruct((bs, nout), jnp.float32),
            jax.ShapeDtypeStruct((bs, nout), jnp.float32),
        ),
        compiler_params=pltpu.CompilerParams(
            dimension_semantics=("arbitrary",)),    # time recurrence is sequential
    )(xs_p, w_cat, off_b, syn0, mem0, s0_bf16)
    return spikes, syn_T, mem_T


def lif_forward_step(x, weight, offset, weight_rec, syn, mem, S, **kw):
    """Single LIF_neuron.forward step (module API; T == 1 sequence)."""
    spikes, syn_T, mem_T = lif_forward_sequence(
        x[None], weight, offset, weight_rec, syn, mem, S, **kw)
    return spikes[0], syn_T, mem_T


def lif_sequence_ref(xs, weight, offset, weight_rec, syn0, mem0, S0,
                     *, alpha=ALPHA, beta=BETA, thr=THR,
                     add_offset=ADD_OFFSET_LIF):
    """Pure-JAX reference of T consecutive LIF_neuron.forward steps, mirroring
    the kernel arithmetic (bf16 matmul operands, f32 accumulation)."""
    T, bs, nin = xs.shape
    nout = weight.shape[1]
    nin_pad = _round_up(nin, 128)
    xs_p = jnp.pad(xs, ((0, 0), (0, 0), (0, nin_pad - nin))).astype(jnp.bfloat16)
    w_p = jnp.pad(weight, ((0, nin_pad - nin), (0, 0)))
    w_cat = jnp.concatenate([w_p, weight_rec], axis=0).astype(jnp.bfloat16)
    off_b = (offset * add_offset).astype(jnp.float32)[None, :]

    syn, mem, S = syn0, mem0, S0.astype(jnp.float32)
    spikes = []
    for t in range(T):
        xcat = jnp.concatenate([xs_p[t], S.astype(jnp.bfloat16)], axis=-1)
        h1 = jnp.dot(xcat, w_cat, preferred_element_type=jnp.float32) + off_b
        new_syn = alpha * syn + h1
        new_mem = beta * mem + new_syn
        out = jnp.where(new_mem - thr > 0.0, 1.0, 0.0).astype(jnp.float32)
        syn = new_syn
        mem = jnp.where(out > 0.0, 0.0, new_mem)
        S = out
        spikes.append(out)
    return jnp.stack(spikes, axis=0), syn, mem


if __name__ == "__main__":
    T, bs, nb_inputs, nb_outputs = 8, 8, 64, 128

    key = jax.random.PRNGKey(0)
    k_x, k_w, k_off, k_rec = jax.random.split(key, 4)

    # Deterministic parameter init matching __init__ (layer != 0, is_recurrent=True).
    fwd_weight_scale = 1.0
    rec_weight_scale = 1.0
    weight = (jax.random.normal(k_w, (nb_inputs, nb_outputs), jnp.float32)
              * (fwd_weight_scale / jnp.sqrt(jnp.float32(nb_inputs))))
    offset = (jax.random.normal(k_off, (nb_outputs,), jnp.float32)
              * (1.0 / jnp.sqrt(jnp.float32(nb_outputs))))
    weight_rec = (jax.random.normal(k_rec, (nb_outputs, nb_outputs), jnp.float32)
                  * (rec_weight_scale / jnp.sqrt(jnp.float32(nb_inputs))))

    # Input spike-train / current sequence and zero-initialized state
    # (self.state is None -> initialize()).
    xs = jax.random.normal(k_x, (T, bs, nb_inputs), jnp.float32)
    syn0 = jnp.zeros((bs, nb_outputs), jnp.float32)
    mem0 = jnp.zeros((bs, nb_outputs), jnp.float32)
    S0 = jnp.zeros((bs, nb_outputs), jnp.float32)

    spikes, syn_T, mem_T = jax.block_until_ready(
        lif_forward_sequence(xs, weight, offset, weight_rec, syn0, mem0, S0))

    spikes_r, syn_r, mem_r = lif_sequence_ref(
        xs, weight, offset, weight_rec, syn0, mem0, S0)

    assert spikes.shape == (T, bs, nb_outputs)
    assert jnp.array_equal(spikes, spikes_r), "spike train mismatch"
    assert jnp.allclose(syn_T, syn_r, atol=1e-4, rtol=1e-4), "syn state mismatch"
    assert jnp.allclose(mem_T, mem_r, atol=1e-4, rtol=1e-4), "mem state mismatch"

    # Single-step API (equivalent of one module.forward call), exercised once.
    out1, syn1, mem1 = jax.block_until_ready(
        lif_forward_step(xs[0], weight, offset, weight_rec, syn0, mem0, S0))
    assert jnp.array_equal(out1, spikes_r[0]), "single-step spike mismatch"

    print("KERNEL_OK")
</pallas_src>

<mosaic_0001>
module attributes {stable_mosaic.version = 11 : i64} {
  func.func @_lif_seq_kernel(%arg0: i32, %arg1: memref<1x8x128xbf16, #tpu.memory_space<vmem>>, %arg2: memref<256x128xbf16, #tpu.memory_space<vmem>>, %arg3: memref<8x128xf32, #tpu.memory_space<vmem>>, %arg4: memref<8x128xf32, #tpu.memory_space<vmem>>, %arg5: memref<8x128xf32, #tpu.memory_space<vmem>>, %arg6: memref<8x128xbf16, #tpu.memory_space<vmem>>, %arg7: memref<1x8x128xf32, #tpu.memory_space<vmem>>, %arg8: memref<8x128xf32, #tpu.memory_space<vmem>>, %arg9: memref<8x128xf32, #tpu.memory_space<vmem>>, %arg10: memref<8x128xf32, #tpu.memory_space<vmem>>, %arg11: memref<8x128xf32, #tpu.memory_space<vmem>>, %arg12: memref<8x128xbf16, #tpu.memory_space<vmem>>) attributes {dimension_semantics = [#tpu.dimension_semantics<arbitrary>], iteration_bounds = array<i64: 8>, scalar_prefetch = 0 : i64, scratch_operands = 3 : i64, tpu.core_type = #tpu.core_type<tc>, window_params = [{transform_indices = @transform_0, window_bounds = array<i64: 1, 8, 128>}, {pipeline_mode = #tpu.pipeline_mode<synchronous>, transform_indices = @transform_1, window_bounds = array<i64: 256, 128>}, {pipeline_mode = #tpu.pipeline_mode<synchronous>, transform_indices = @transform_2, window_bounds = array<i64: 8, 128>}, {pipeline_mode = #tpu.pipeline_mode<synchronous>, transform_indices = @transform_3, window_bounds = array<i64: 8, 128>}, {pipeline_mode = #tpu.pipeline_mode<synchronous>, transform_indices = @transform_4, window_bounds = array<i64: 8, 128>}, {pipeline_mode = #tpu.pipeline_mode<synchronous>, transform_indices = @transform_5, window_bounds = array<i64: 8, 128>}, {transform_indices = @transform_6, window_bounds = array<i64: 1, 8, 128>}, {pipeline_mode = #tpu.pipeline_mode<synchronous>, transform_indices = @transform_7, window_bounds = array<i64: 8, 128>}, {pipeline_mode = #tpu.pipeline_mode<synchronous>, transform_indices = @transform_8, window_bounds = array<i64: 8, 128>}]} {
    %c0_i32 = arith.constant 0 : i32
    %0 = arith.cmpi eq, %arg0, %c0_i32 : i32
    %1 = arith.extui %0 : i1 to i32
    %c0_i32_0 = arith.constant 0 : i32
    %2 = arith.cmpi ne, %1, %c0_i32_0 : i32
    scf.if %2 {
      %c0_30 = arith.constant 0 : index
      %c0_31 = arith.constant 0 : index
      %38 = vector.load %arg4[%c0_30, %c0_31] : memref<8x128xf32, #tpu.memory_space<vmem>>, vector<8x128xf32>
      %c0_32 = arith.constant 0 : index
      %c0_33 = arith.constant 0 : index
      %39 = vector.load %arg10[%c0_32, %c0_33] : memref<8x128xf32, #tpu.memory_space<vmem>>, vector<8x128xf32>
      tpu.vector_store %arg10[%c0_32, %c0_33], %38 {strides = array<i32>} : memref<8x128xf32, #tpu.memory_space<vmem>>, vector<8x128xf32>,
      %c0_34 = arith.constant 0 : index
      %c0_35 = arith.constant 0 : index
      %40 = vector.load %arg5[%c0_34, %c0_35] : memref<8x128xf32, #tpu.memory_space<vmem>>, vector<8x128xf32>
      %c0_36 = arith.constant 0 : index
      %c0_37 = arith.constant 0 : index
      %41 = vector.load %arg11[%c0_36, %c0_37] : memref<8x128xf32, #tpu.memory_space<vmem>>, vector<8x128xf32>
      tpu.vector_store %arg11[%c0_36, %c0_37], %40 {strides = array<i32>} : memref<8x128xf32, #tpu.memory_space<vmem>>, vector<8x128xf32>,
      %c0_38 = arith.constant 0 : index
      %c0_39 = arith.constant 0 : index
      %42 = vector.load %arg6[%c0_38, %c0_39] : memref<8x128xbf16, #tpu.memory_space<vmem>>, vector<8x128xbf16>
      %c0_40 = arith.constant 0 : index
      %c0_41 = arith.constant 0 : index
      %43 = vector.load %arg12[%c0_40, %c0_41] : memref<8x128xbf16, #tpu.memory_space<vmem>>, vector<8x128xbf16>
      tpu.vector_store %arg12[%c0_40, %c0_41], %42 {strides = array<i32>} : memref<8x128xbf16, #tpu.memory_space<vmem>>, vector<8x128xbf16>,
    } else {
    }
    %c0 = arith.constant 0 : index
    %c0_1 = arith.constant 0 : index
    %c0_2 = arith.constant 0 : index
    %3 = vector.load %arg1[%c0, %c0_1, %c0_2] : memref<1x8x128xbf16, #tpu.memory_space<vmem>>, vector<1x8x128xbf16>
    %4 = vector.shape_cast %3 : vector<1x8x128xbf16> to vector<8x128xbf16>
    %c0_3 = arith.constant 0 : index
    %c0_4 = arith.constant 0 : index
    %5 = vector.load %arg12[%c0_3, %c0_4] : memref<8x128xbf16, #tpu.memory_space<vmem>>, vector<8x128xbf16>
    %6 = tpu.concatenate %4, %5 in 1 : vector<8x128xbf16>, vector<8x128xbf16> -> vector<8x256xbf16>
    %c0_5 = arith.constant 0 : index
    %c0_6 = arith.constant 0 : index
    %7 = vector.load %arg2[%c0_5, %c0_6] : memref<256x128xbf16, #tpu.memory_space<vmem>>, vector<256x128xbf16>
    %cst = arith.constant dense<0.000000e+00> : vector<8x128xf32>
    %8 = tpu.matmul %6, %7, %cst {dimension_numbers = #tpu.dot_dimension_numbers<[1], [0], [0], [1], [0, 0, 1, 1], [], []>} : vector<8x256xbf16>, vector<256x128xbf16>, vector<8x128xf32> -> vector<8x128xf32>
    %c0_7 = arith.constant 0 : index
    %c0_8 = arith.constant 0 : index
    %9 = vector.load %arg3[%c0_7, %c0_8] : memref<8x128xf32, #tpu.memory_space<vmem>>, vector<8x128xf32>
    %10 = arith.addf %8, %9 : vector<8x128xf32>
    %c0_9 = arith.constant 0 : index
    %c0_10 = arith.constant 0 : index
    %11 = vector.load %arg10[%c0_9, %c0_10] : memref<8x128xf32, #tpu.memory_space<vmem>>, vector<8x128xf32>
    %cst_11 = arith.constant 0.899999976 : f32
    %12 = vector.broadcast %cst_11 : f32 to vector<8x128xf32>
    %13 = arith.mulf %12, %11 : vector<8x128xf32>
    %14 = arith.addf %13, %10 : vector<8x128xf32>
    %c0_12 = arith.constant 0 : index
    %c0_13 = arith.constant 0 : index
    %15 = vector.load %arg11[%c0_12, %c0_13] : memref<8x128xf32, #tpu.memory_space<vmem>>, vector<8x128xf32>
    %cst_14 = arith.constant 8.500000e-01 : f32
    %16 = vector.broadcast %cst_14 : f32 to vector<8x128xf32>
    %17 = arith.mulf %16, %15 : vector<8x128xf32>
    %18 = arith.addf %17, %14 : vector<8x128xf32>
    %cst_15 = arith.constant 1.000000e+00 : f32
    %19 = vector.broadcast %cst_15 : f32 to vector<8x128xf32>
    %20 = arith.subf %18, %19 : vector<8x128xf32>
    %cst_16 = arith.constant 0.000000e+00 : f32
    %21 = vector.broadcast %cst_16 : f32 to vector<8x128xf32>
    %22 = arith.cmpf ogt, %20, %21 : vector<8x128xf32>
    %cst_17 = arith.constant 1.000000e+00 : f32
    %cst_18 = arith.constant 0.000000e+00 : f32
    %23 = vector.broadcast %cst_17 : f32 to vector<8x128xf32>
    %24 = vector.broadcast %cst_18 : f32 to vector<8x128xf32>
    %25 = arith.select %22, %23, %24 : vector<8x128xi1>, vector<8x128xf32>
    %c0_19 = arith.constant 0 : index
    %c0_20 = arith.constant 0 : index
    %c0_21 = arith.constant 0 : index
    %26 = vector.load %arg7[%c0_19, %c0_20, %c0_21] : memref<1x8x128xf32, #tpu.memory_space<vmem>>, vector<1x8x128xf32>
    %27 = vector.shape_cast %26 : vector<1x8x128xf32> to vector<8x128xf32>
    %28 = vector.shape_cast %25 : vector<8x128xf32> to vector<1x8x128xf32>
    tpu.vector_store %arg7[%c0_19, %c0_20, %c0_21], %28 {strides = array<i32>} : memref<1x8x128xf32, #tpu.memory_space<vmem>>, vector<1x8x128xf32>,
    %c0_22 = arith.constant 0 : index
    %c0_23 = arith.constant 0 : index
    %29 = vector.load %arg10[%c0_22, %c0_23] : memref<8x128xf32, #tpu.memory_space<vmem>>, vector<8x128xf32>
    tpu.vector_store %arg10[%c0_22, %c0_23], %14 {strides = array<i32>} : memref<8x128xf32, #tpu.memory_space<vmem>>, vector<8x128xf32>,
    %cst_24 = arith.constant 0.000000e+00 : f32
    %30 = vector.broadcast %cst_24 : f32 to vector<8x128xf32>
    %31 = arith.select %22, %30, %18 : vector<8x128xi1>, vector<8x128xf32>
    %c0_25 = arith.constant 0 : index
    %c0_26 = arith.constant 0 : index
    %32 = vector.load %arg11[%c0_25, %c0_26] : memref<8x128xf32, #tpu.memory_space<vmem>>, vector<8x128xf32>
    tpu.vector_store %arg11[%c0_25, %c0_26], %31 {strides = array<i32>} : memref<8x128xf32, #tpu.memory_space<vmem>>, vector<8x128xf32>,
    %33 = arith.truncf %25 : vector<8x128xf32> to vector<8x128xbf16>
    %c0_27 = arith.constant 0 : index
    %c0_28 = arith.constant 0 : index
    %34 = vector.load %arg12[%c0_27, %c0_28] : memref<8x128xbf16, #tpu.memory_space<vmem>>, vector<8x128xbf16>
    tpu.vector_store %arg12[%c0_27, %c0_28], %33 {strides = array<i32>} : memref<8x128xbf16, #tpu.memory_space<vmem>>, vector<8x128xbf16>,
    %c7_i32 = arith.constant 7 : i32
    %35 = arith.cmpi eq, %arg0, %c7_i32 : i32
    %36 = arith.extui %35 : i1 to i32
    %c0_i32_29 = arith.constant 0 : i32
    %37 = arith.cmpi ne, %36, %c0_i32_29 : i32
    scf.if %37 {
      %c0_30 = arith.constant 0 : index
      %c0_31 = arith.constant 0 : index
      %38 = vector.load %arg10[%c0_30, %c0_31] : memref<8x128xf32, #tpu.memory_space<vmem>>, vector<8x128xf32>
      %c0_32 = arith.constant 0 : index
      %c0_33 = arith.constant 0 : index
      %39 = vector.load %arg8[%c0_32, %c0_33] : memref<8x128xf32, #tpu.memory_space<vmem>>, vector<8x128xf32>
      tpu.vector_store %arg8[%c0_32, %c0_33], %38 {strides = array<i32>} : memref<8x128xf32, #tpu.memory_space<vmem>>, vector<8x128xf32>,
      %c0_34 = arith.constant 0 : index
      %c0_35 = arith.constant 0 : index
      %40 = vector.load %arg11[%c0_34, %c0_35] : memref<8x128xf32, #tpu.memory_space<vmem>>, vector<8x128xf32>
      %c0_36 = arith.constant 0 : index
      %c0_37 = arith.constant 0 : index
      %41 = vector.load %arg9[%c0_36, %c0_37] : memref<8x128xf32, #tpu.memory_space<vmem>>, vector<8x128xf32>
      tpu.vector_store %arg9[%c0_36, %c0_37], %40 {strides = array<i32>} : memref<8x128xf32, #tpu.memory_space<vmem>>, vector<8x128xf32>,
    } else {
    }
    return
  }
  func.func @transform_0(%arg0: i32) -> (i32, i32, i32) {
    %c0_i32 = arith.constant 0 : i32
    %c0_i32_0 = arith.constant 0 : i32
    %c0_i32_1 = arith.constant 0 : i32
    return %arg0, %c0_i32, %c0_i32_0 : i32, i32, i32
  }
  func.func @transform_1(%arg0: i32) -> (i32, i32) {
    %c0_i32 = arith.constant 0 : i32
    %c0_i32_0 = arith.constant 0 : i32
    %c0_i32_1 = arith.constant 0 : i32
    return %c0_i32, %c0_i32_0 : i32, i32
  }
  func.func @transform_2(%arg0: i32) -> (i32, i32) {
    %c0_i32 = arith.constant 0 : i32
    %c0_i32_0 = arith.constant 0 : i32
    %c0_i32_1 = arith.constant 0 : i32
    return %c0_i32, %c0_i32_0 : i32, i32
  }
  func.func @transform_3(%arg0: i32) -> (i32, i32) {
    %c0_i32 = arith.constant 0 : i32
    %c0_i32_0 = arith.constant 0 : i32
    %c0_i32_1 = arith.constant 0 : i32
    return %c0_i32, %c0_i32_0 : i32, i32
  }
  func.func @transform_4(%arg0: i32) -> (i32, i32) {
    %c0_i32 = arith.constant 0 : i32
    %c0_i32_0 = arith.constant 0 : i32
    %c0_i32_1 = arith.constant 0 : i32
    return %c0_i32, %c0_i32_0 : i32, i32
  }
  func.func @transform_5(%arg0: i32) -> (i32, i32) {
    %c0_i32 = arith.constant 0 : i32
    %c0_i32_0 = arith.constant 0 : i32
    %c0_i32_1 = arith.constant 0 : i32
    return %c0_i32, %c0_i32_0 : i32, i32
  }
  func.func @transform_6(%arg0: i32) -> (i32, i32, i32) {
    %c0_i32 = arith.constant 0 : i32
    %c0_i32_0 = arith.constant 0 : i32
    %c0_i32_1 = arith.constant 0 : i32
    return %arg0, %c0_i32, %c0_i32_0 : i32, i32, i32
  }
  func.func @transform_7(%arg0: i32) -> (i32, i32) {
    %c0_i32 = arith.constant 0 : i32
    %c0_i32_0 = arith.constant 0 : i32
    %c0_i32_1 = arith.constant 0 : i32
    return %c0_i32, %c0_i32_0 : i32, i32
  }
  func.func @transform_8(%arg0: i32) -> (i32, i32) {
    %c0_i32 = arith.constant 0 : i32
    %c0_i32_0 = arith.constant 0 : i32
    %c0_i32_1 = arith.constant 0 : i32
    return %c0_i32, %c0_i32_0 : i32, i32
  }
}

</mosaic_0001>

<llo_original>
// kernel: tpu_custom_call.1
$region0: #{tpu_custom_call.1}
  #allocation0 [shape = 'u32[]', space=smem, size = 0x4, offset = 0x4, fixed_abs, tag = 'smem constant byte address 0x4 - core index']
  #allocation1 [shape = 'u32[72,128]{1,0:T(1,128)}', space=vmem, size = 0x9000, scoped, tag = 'internal scratch']
  #allocation2 [shape = 'f32[8,128]{1,0:T(8,128)}', space=vmem, size = 0x1000, scoped, tag = 'scratch operand']
  #allocation3 [shape = 'f32[8,128]{1,0:T(8,128)}', space=vmem, size = 0x1000, scoped, tag = 'scratch operand']
  #allocation4 [shape = 'bf16[8,128]{1,0:T(8,128)(2,1)}', space=vmem, size = 0x800, scoped, tag = 'scratch operand']
  %s0 = inlined_call_operand.hbm [shape: bf16[8,8,128], index: 0, kind: input, shape index: {}]
  %s1 = inlined_call_operand.hbm [shape: bf16[256,128], index: 1, kind: input, shape index: {}]
  %s2 = inlined_call_operand.hbm [shape: f32[8,128], index: 2, kind: input, shape index: {}]
  %s3 = inlined_call_operand.hbm [shape: f32[8,128], index: 3, kind: input, shape index: {}]
  %s4 = inlined_call_operand.hbm [shape: f32[8,128], index: 4, kind: input, shape index: {}]
  %s5 = inlined_call_operand.vmem [shape: bf16[8,128], index: 5, kind: input, shape index: {}]
  %s6 = inlined_call_operand.hbm [shape: f32[8,8,128], index: 6, kind: output, shape index: {0}]
  %s7 = inlined_call_operand.hbm [shape: f32[8,128], index: 7, kind: output, shape index: {1}]
  %s8 = inlined_call_operand.hbm [shape: f32[8,128], index: 8, kind: output, shape index: {2}]
  %9 = xla_tuple %s6, %s7, %s8
  %s10 = sld [smem:[#allocation0]]
  $region101: #{tpu_custom_call.1} parent=0
    _
  %s12 = ssub.s32 1, %s10
  %s13 = scalar_select 0, %s12, %s10
  $region1: #{tpu_custom_call.1} parent=0
    #allocation5 [shape = 'u8[4096]{0}', space=vmem, size = 0x1000, scoped, tag = 'input window, operand 0']
    #allocation6 [shape = 's32[2]{0}', space=sflag, size = 0x8, scoped, tag = 'scoped memory for tpu_custom_call.1']
    #allocation7 [shape = 's32[2]{0}', space=sflag, size = 0x8, scoped, tag = 'scoped memory for tpu_custom_call.1']
    #allocation8 [shape = 'u8[65536]{0}', space=vmem, size = 0x10000, scoped, tag = 'input window, operand 1, single buffered']
    #allocation9 [shape = 's32[1]{0}', space=sflag, size = 0x4, scoped, tag = 'scoped memory for tpu_custom_call.1']
    #allocation10 [shape = 'u8[4096]{0}', space=vmem, size = 0x1000, scoped, tag = 'input window, operand 2, single buffered']
    #allocation11 [shape = 'u8[4096]{0}', space=vmem, size = 0x1000, scoped, tag = 'input window, operand 3, single buffered']
    #allocation12 [shape = 's32[1]{0}', space=sflag, size = 0x4, scoped, tag = 'scoped memory for tpu_custom_call.1']
    #allocation13 [shape = 'u8[4096]{0}', space=vmem, size = 0x1000, scoped, tag = 'input window, operand 4, single buffered']
    #allocation14 [shape = 'u8[8192]{0}', space=vmem, size = 0x2000, scoped, tag = 'output window, operand 0']
    #allocation15 [shape = 'u8[4096]{0}', space=vmem, size = 0x1000, scoped, tag = 'output window, operand 1, single buffered']
    #allocation16 [shape = 's32[1]{0}', space=sflag, size = 0x4, scoped, tag = 'scoped memory for tpu_custom_call.1']
    #allocation17 [shape = 'u8[4096]{0}', space=vmem, size = 0x1000, scoped, tag = 'output window, operand 2, single buffered']
    %14 = vsyncpa [#allocation6], 0
    %s15 = scalar_lea.sflag [#allocation6], 1
    %16 = vsyncpa %s15, 0
    %17 = vsyncpa [#allocation9], 0
    %18 = vsyncpa [#allocation12], 0
    %19 = vsyncpa [#allocation7], 0
    %s20 = scalar_lea.sflag [#allocation7], 1
    %21 = vsyncpa %s20, 0
    %22 = vsyncpa [#allocation16], 0
    loop: start=0, step=1, limit=10
    $region2: #{tpu_custom_call.1} parent=1 // loop_pre_header
      _
    $region3: #{tpu_custom_call.1} parent=1 // loop_header
      %s24 = sphi 0, %s28
      %p25 = scmp.ge.s32.totalorder %s24, 10
      %s34 = sphi 0, %s36
      %s37 = sphi 0, %s34
      %s38 = sphi 0, %s37
      %s54 = sphi 0, %s38
      %s58 = sphi 0, %s58
      %s60 = sphi 0, %s58
      %s61 = sphi 0, %s60
      %s75 = sphi 0, %s61
      %s79 = sphi 0, %s79
      %s81 = sphi 0, %s79
      %s82 = sphi 0, %s81
      %s96 = sphi 0, %s82
      %s100 = sphi 0, %s100
      %s102 = sphi 0, %s100
      %s103 = sphi 0, %s102
      %s117 = sphi 0, %s103
      %s121 = sphi 0, %s121
      %s123 = sphi 0, %s121
      %s124 = sphi 0, %s123
      %s138 = sphi 0, %s124
      %s142 = sphi 0, %s142
      %s144 = sphi 0, %s142
      %s145 = sphi 0, %s144
      %s159 = sphi 0, %s145
      %s165 = sphi 0, %s167
      %s168 = sphi 0, %s165
      %s169 = sphi 0, %s168
      %s185 = sphi 0, %s169
      %s189 = sphi 0, %s189
      %s191 = sphi 0, %s189
      %s192 = sphi 0, %s191
      %s206 = sphi 0, %s192
      %s210 = sphi 0, %s210
      %s212 = sphi 0, %s210
      %s213 = sphi 0, %s212
      %s227 = sphi 0, %s213
    $region4: #{tpu_custom_call.1} parent=1 // loop_header_branch
      %27 = sbr.rel (%p25) target = $region8
    $region5: #{tpu_custom_call.1} parent=1 // loop_body
      %s29 = ssub.s32 %s24, 1
      %s30 = ssub.s32 %s24, 2
      %s31 = sadd.s32 %s24, 1
      %s32 = ssub.s32 %s24, %s31
      %p33 = scmp.eq.s32.totalorder %s32, 0
      %s35 = sadd.s32 %s34, 1
      %s36 = scalar_select %p33, %s34, %s35
      %p39 = pneg %p33
      %p40 = scmp.eq.s32.totalorder %s24, 7
      %p41 = por %p39, %p40
      %p42 = scmp.ne.s32.totalorder %s34, %s37
      %p43 = scmp.eq.s32.totalorder %s24, 0
      %p44 = por %p42, %p43
      %p45 = scmp.ne.s32.totalorder %s34, %s37
      %p46 = scmp.eq.s32.totalorder %s29, 7
      %p47 = por %p45, %p46
      %p48 = scmp.ne.s32.totalorder %s37, %s38
      %p49 = scmp.eq.s32.totalorder %s29, 0
      %p50 = por %p48, %p49
      %p51 = scmp.ne.s32.totalorder %s37, %s38
      %p52 = scmp.eq.s32.totalorder %s30, 7
      %p53 = por %p51, %p52
      %p55 = scmp.ne.s32.totalorder %s38, %s54
      %p56 = scmp.eq.s32.totalorder %s30, 0
      %p57 = por %p55, %p56
      %s59 = sadd.s32 %s58, 1
      %p62 = scmp.eq.s32.totalorder %s24, 7
      %p63 = scmp.ne.s32.totalorder %s58, %s60
      %p64 = scmp.eq.s32.totalorder %s24, 0
      %p65 = por %p63, %p64
      %p66 = scmp.ne.s32.totalorder %s58, %s60
      %p67 = scmp.eq.s32.totalorder %s29, 7
      %p68 = por %p66, %p67
      %p69 = scmp.ne.s32.totalorder %s60, %s61
      %p70 = scmp.eq.s32.totalorder %s29, 0
      %p71 = por %p69, %p70
      %p72 = scmp.ne.s32.totalorder %s60, %s61
      %p73 = scmp.eq.s32.totalorder %s30, 7
      %p74 = por %p72, %p73
      %p76 = scmp.ne.s32.totalorder %s61, %s75
      %p77 = scmp.eq.s32.totalorder %s30, 0
      %p78 = por %p76, %p77
      %s80 = sadd.s32 %s79, 1
      %p83 = scmp.eq.s32.totalorder %s24, 7
      %p84 = scmp.ne.s32.totalorder %s79, %s81
      %p85 = scmp.eq.s32.totalorder %s24, 0
      %p86 = por %p84, %p85
      %p87 = scmp.ne.s32.totalorder %s79, %s81
      %p88 = scmp.eq.s32.totalorder %s29, 7
      %p89 = por %p87, %p88
      %p90 = scmp.ne.s32.totalorder %s81, %s82
      %p91 = scmp.eq.s32.totalorder %s29, 0
      %p92 = por %p90, %p91
      %p93 = scmp.ne.s32.totalorder %s81, %s82
      %p94 = scmp.eq.s32.totalorder %s30, 7
      %p95 = por %p93, %p94
      %p97 = scmp.ne.s32.totalorder %s82, %s96
      %p98 = scmp.eq.s32.totalorder %s30, 0
      %p99 = por %p97, %p98
      %s101 = sadd.s32 %s100, 1
      %p104 = scmp.eq.s32.totalorder %s24, 7
      %p105 = scmp.ne.s32.totalorder %s100, %s102
      %p106 = scmp.eq.s32.totalorder %s24, 0
      %p107 = por %p105, %p106
      %p108 = scmp.ne.s32.totalorder %s100, %s102
      %p109 = scmp.eq.s32.totalorder %s29, 7
      %p110 = por %p108, %p109
      %p111 = scmp.ne.s32.totalorder %s102, %s103
      %p112 = scmp.eq.s32.totalorder %s29, 0
      %p113 = por %p111, %p112
      %p114 = scmp.ne.s32.totalorder %s102, %s103
      %p115 = scmp.eq.s32.totalorder %s30, 7
      %p116 = por %p114, %p115
      %p118 = scmp.ne.s32.totalorder %s103, %s117
      %p119 = scmp.eq.s32.totalorder %s30, 0
      %p120 = por %p118, %p119
      %s122 = sadd.s32 %s121, 1
      %p125 = scmp.eq.s32.totalorder %s24, 7
      %p126 = scmp.ne.s32.totalorder %s121, %s123
      %p127 = scmp.eq.s32.totalorder %s24, 0
      %p128 = por %p126, %p127
      %p129 = scmp.ne.s32.totalorder %s121, %s123
      %p130 = scmp.eq.s32.totalorder %s29, 7
      %p131 = por %p129, %p130
      %p132 = scmp.ne.s32.totalorder %s123, %s124
      %p133 = scmp.eq.s32.totalorder %s29, 0
      %p134 = por %p132, %p133
      %p135 = scmp.ne.s32.totalorder %s123, %s124
      %p136 = scmp.eq.s32.totalorder %s30, 7
      %p137 = por %p135, %p136
      %p139 = scmp.ne.s32.totalorder %s124, %s138
      %p140 = scmp.eq.s32.totalorder %s30, 0
      %p141 = por %p139, %p140
      %s143 = sadd.s32 %s142, 1
      %p146 = scmp.eq.s32.totalorder %s24, 7
      %p147 = scmp.ne.s32.totalorder %s142, %s144
      %p148 = scmp.eq.s32.totalorder %s24, 0
      %p149 = por %p147, %p148
      %p150 = scmp.ne.s32.totalorder %s142, %s144
      %p151 = scmp.eq.s32.totalorder %s29, 7
      %p152 = por %p150, %p151
      %p153 = scmp.ne.s32.totalorder %s144, %s145
      %p154 = scmp.eq.s32.totalorder %s29, 0
      %p155 = por %p153, %p154
      %p156 = scmp.ne.s32.totalorder %s144, %s145
      %p157 = scmp.eq.s32.totalorder %s30, 7
      %p158 = por %p156, %p157
      %p160 = scmp.ne.s32.totalorder %s145, %s159
      %p161 = scmp.eq.s32.totalorder %s30, 0
      %p162 = por %p160, %p161
      %s163 = ssub.s32 %s24, %s31
      %p164 = scmp.eq.s32.totalorder %s163, 0
      %s166 = sadd.s32 %s165, 1
      %s167 = scalar_select %p164, %s165, %s166
      %p170 = pneg %p164
      %p171 = scmp.eq.s32.totalorder %s24, 7
      %p172 = por %p170, %p171
      %p173 = scmp.ne.s32.totalorder %s165, %s168
      %p174 = scmp.eq.s32.totalorder %s24, 0
      %p175 = por %p173, %p174
      %p176 = scmp.ne.s32.totalorder %s165, %s168
      %p177 = scmp.eq.s32.totalorder %s29, 7
      %p178 = por %p176, %p177
      %p179 = scmp.ne.s32.totalorder %s168, %s169
      %p180 = scmp.eq.s32.totalorder %s29, 0
      %p181 = por %p179, %p180
      %p182 = scmp.ne.s32.totalorder %s168, %s169
      %p183 = scmp.eq.s32.totalorder %s30, 7
      %p184 = por %p182, %p183
      %p186 = scmp.ne.s32.totalorder %s169, %s185
      %p187 = scmp.eq.s32.totalorder %s30, 0
      %p188 = por %p186, %p187
      %s190 = sadd.s32 %s189, 1
      %p193 = scmp.eq.s32.totalorder %s24, 7
      %p194 = scmp.ne.s32.totalorder %s189, %s191
      %p195 = scmp.eq.s32.totalorder %s24, 0
      %p196 = por %p194, %p195
      %p197 = scmp.ne.s32.totalorder %s189, %s191
      %p198 = scmp.eq.s32.totalorder %s29, 7
      %p199 = por %p197, %p198
      %p200 = scmp.ne.s32.totalorder %s191, %s192
      %p201 = scmp.eq.s32.totalorder %s29, 0
      %p202 = por %p200, %p201
      %p203 = scmp.ne.s32.totalorder %s191, %s192
      %p204 = scmp.eq.s32.totalorder %s30, 7
      %p205 = por %p203, %p204
      %p207 = scmp.ne.s32.totalorder %s192, %s206
      %p208 = scmp.eq.s32.totalorder %s30, 0
      %p209 = por %p207, %p208
      %s211 = sadd.s32 %s210, 1
      %p214 = scmp.eq.s32.totalorder %s24, 7
      %p215 = scmp.ne.s32.totalorder %s210, %s212
      %p216 = scmp.eq.s32.totalorder %s24, 0
      %p217 = por %p215, %p216
      %p218 = scmp.ne.s32.totalorder %s210, %s212
      %p219 = scmp.eq.s32.totalorder %s29, 7
      %p220 = por %p218, %p219
      %p221 = scmp.ne.s32.totalorder %s212, %s213
      %p222 = scmp.eq.s32.totalorder %s29, 0
      %p223 = por %p221, %p222
      %p224 = scmp.ne.s32.totalorder %s212, %s213
      %p225 = scmp.eq.s32.totalorder %s30, 7
      %p226 = por %p224, %p225
      %p228 = scmp.ne.s32.totalorder %s213, %s227
      %p229 = scmp.eq.s32.totalorder %s30, 0
      %p230 = por %p228, %p229
      %p231 = scmp.le.s32.totalorder 1, %s24
      %p232 = scmp.lt.s32.totalorder %s24, 9
      %p233 = pnand %p231, %p232
      %p234 = pneg %p233
      // Predicated region
      $region9: #{tpu_custom_call.1} parent=5 // pred_check
        _
      $region10: #{tpu_custom_call.1} parent=5 // pred_check_branch
        %236 = sbr.rel (%p233) target = $region12
      $region11: #{tpu_custom_call.1} parent=5 // pred_region
        %s237 = ssub.s32 %s24, 1
        // Predicated region
        $region13: #{tpu_custom_call.1} parent=11 // pred_check
          %p238 = pneg %p71
        $region14: #{tpu_custom_call.1} parent=11 // pred_check_branch
          %240 = sbr.rel (%p238) target = $region16
        $region15: #{tpu_custom_call.1} parent=11 // pred_region
          %242 = vsyncadd [#allocation9], 0
          %s243 = sshll.u32 %s1, 4
          %s244 = int_to_ptr.hbm [resolvable:$true] %s243
          %s245 = sshll.u32 [#allocation8], 4
          %s246 = int_to_ptr.vmem [resolvable:$true] %s245
          %251 = dma.hbm_to_vmem [thread:$0]  %s244, 2048, %s246, [#allocation9], 64, 64, 4
        $region16: #{tpu_custom_call.1} parent=11 // pred_fallthru
          _
        // Predicated region
        $region17: #{tpu_custom_call.1} parent=11 // pred_check
          %p252 = pneg %p92
        $region18: #{tpu_custom_call.1} parent=11 // pred_check_branch
          %254 = sbr.rel (%p252) target = $region20
        $region19: #{tpu_custom_call.1} parent=11 // pred_region
          %256 = vsyncadd [#allocation9], 0
          %s258 = sshll.u32 %s2, 4
          %s259 = int_to_ptr.hbm [resolvable:$true] %s258
          %s260 = sshll.u32 [#allocation10], 4
          %s261 = int_to_ptr.vmem [resolvable:$true] %s260
          %263 = dma.hbm_to_vmem [thread:$0]  %s259, 128, %s261, [#allocation9]
        $region20: #{tpu_custom_call.1} parent=11 // pred_fallthru
          _
        // Predicated region
        $region21: #{tpu_custom_call.1} parent=11 // pred_check
          %p264 = pneg %p113
        $region22: #{tpu_custom_call.1} parent=11 // pred_check_branch
          %266 = sbr.rel (%p264) target = $region24
        $region23: #{tpu_custom_call.1} parent=11 // pred_region
          %268 = vsyncadd [#allocation12], 0
          %s270 = sshll.u32 %s3, 4
          %s271 = int_to_ptr.hbm [resolvable:$true] %s270
          %s272 = sshll.u32 [#allocation11], 4
          %s273 = int_to_ptr.vmem [resolvable:$true] %s272
          %275 = dma.hbm_to_vmem [thread:$0]  %s271, 128, %s273, [#allocation12]
        $region24: #{tpu_custom_call.1} parent=11 // pred_fallthru
          _
        // Predicated region
        $region25: #{tpu_custom_call.1} parent=11 // pred_check
          %p276 = pneg %p134
        $region26: #{tpu_custom_call.1} parent=11 // pred_check_branch
          %278 = sbr.rel (%p276) target = $region28
        $region27: #{tpu_custom_call.1} parent=11 // pred_region
          %280 = vsyncadd [#allocation12], 0
          %s282 = sshll.u32 %s4, 4
          %s283 = int_to_ptr.hbm [resolvable:$true] %s282
          %s284 = sshll.u32 [#allocation13], 4
          %s285 = int_to_ptr.vmem [resolvable:$true] %s284
          %287 = dma.hbm_to_vmem [thread:$0]  %s283, 128, %s285, [#allocation12]
        $region28: #{tpu_custom_call.1} parent=11 // pred_fallthru
          _
        // Predicated region
        $region29: #{tpu_custom_call.1} parent=11 // pred_check
          %p288 = pneg %p155
        $region30: #{tpu_custom_call.1} parent=11 // pred_check_branch
          %290 = sbr.rel (%p288) target = $region32
        $region31: #{tpu_custom_call.1} parent=11 // pred_region
          _
        $region32: #{tpu_custom_call.1} parent=11 // pred_fallthru
          _
      $region12: #{tpu_custom_call.1} parent=5 // pred_fallthru
        _
      %p291 = scmp.lt.s32.totalorder %s24, 8
      // Predicated region
      $region33: #{tpu_custom_call.1} parent=5 // pred_check
        %p292 = pneg %p291
      $region34: #{tpu_custom_call.1} parent=5 // pred_check_branch
        %294 = sbr.rel (%p292) target = $region36
      $region35: #{tpu_custom_call.1} parent=5 // pred_region
        // Predicated region
        $region37: #{tpu_custom_call.1} parent=35 // pred_check
          %p295 = pneg %p44
        $region38: #{tpu_custom_call.1} parent=35 // pred_check_branch
          %297 = sbr.rel (%p295) target = $region40
        $region39: #{tpu_custom_call.1} parent=35 // pred_region
          %s298 = sand.u32 %s34, 1
          %s299 = scalar_lea.sflag [#allocation6], %s298
          %s300 = sand.u32 %s34, 1
          %s301 = smul.addr %s300, 4
          %s302 = scalar_lea.vmem [#allocation5], %s301
          %304 = vsyncadd %s299, 0
          %s305 = smul.addr %s24, 4
          %s306 = scalar_lea.hbm %s0, %s305
          %s308 = sshll.u32 %s306, 4
          %s309 = int_to_ptr.hbm [resolvable:$true] %s308
          %s310 = sshll.u32 %s302, 4
          %s311 = int_to_ptr.vmem [resolvable:$true] %s310
          %313 = dma.hbm_to_vmem [thread:$0]  %s309, 64, %s311, %s299
        $region40: #{tpu_custom_call.1} parent=35 // pred_fallthru
          _
      $region36: #{tpu_custom_call.1} parent=5 // pred_fallthru
        _
      %p314 = scmp.le.s32.totalorder 1, %s24
      %p315 = scmp.lt.s32.totalorder %s24, 9
      %p316 = pnand %p314, %p315
      %p317 = pneg %p316
      // Predicated region
      $region41: #{tpu_custom_call.1} parent=5 // pred_check
        _
      $region42: #{tpu_custom_call.1} parent=5 // pred_check_branch
        %319 = sbr.rel (%p316) target = $region44
      $region43: #{tpu_custom_call.1} parent=5 // pred_region
        %s320 = ssub.s32 %s24, 1
        %s321 = sand.u32 %s37, 1
        %s322 = scalar_lea.sflag [#allocation6], %s321
        %s323 = sand.u32 %s37, 1
        %s324 = smul.addr %s323, 4
        %s325 = scalar_lea.vmem [#allocation5], %s324
        // Predicated region
        $region45: #{tpu_custom_call.1} parent=43 // pred_check
          %p326 = pneg %p50
        $region46: #{tpu_custom_call.1} parent=43 // pred_check_branch
          %328 = sbr.rel (%p326) target = $region48
        $region47: #{tpu_custom_call.1} parent=43 // pred_region
          %330 = dma.done %s322, 64
        $region48: #{tpu_custom_call.1} parent=43 // pred_fallthru
          _
        // Predicated region
        $region49: #{tpu_custom_call.1} parent=43 // pred_check
          %p331 = pneg %p71
        $region50: #{tpu_custom_call.1} parent=43 // pred_check_branch
          %333 = sbr.rel (%p331) target = $region52
        $region51: #{tpu_custom_call.1} parent=43 // pred_region
          %335 = dma.done [#allocation9], 2048
        $region52: #{tpu_custom_call.1} parent=43 // pred_fallthru
          _
        // Predicated region
        $region53: #{tpu_custom_call.1} parent=43 // pred_check
          %p336 = pneg %p92
        $region54: #{tpu_custom_call.1} parent=43 // pred_check_branch
          %338 = sbr.rel (%p336) target = $region56
        $region55: #{tpu_custom_call.1} parent=43 // pred_region
          %340 = dma.done [#allocation9], 128
        $region56: #{tpu_custom_call.1} parent=43 // pred_fallthru
          _
        // Predicated region
        $region57: #{tpu_custom_call.1} parent=43 // pred_check
          %p341 = pneg %p113
        $region58: #{tpu_custom_call.1} parent=43 // pred_check_branch
          %343 = sbr.rel (%p341) target = $region60
        $region59: #{tpu_custom_call.1} parent=43 // pred_region
          %345 = dma.done [#allocation12], 128
        $region60: #{tpu_custom_call.1} parent=43 // pred_fallthru
          _
        // Predicated region
        $region61: #{tpu_custom_call.1} parent=43 // pred_check
          %p346 = pneg %p134
        $region62: #{tpu_custom_call.1} parent=43 // pred_check_branch
          %348 = sbr.rel (%p346) target = $region64
        $region63: #{tpu_custom_call.1} parent=43 // pred_region
          %350 = dma.done [#allocation12], 128
        $region64: #{tpu_custom_call.1} parent=43 // pred_fallthru
          _
        %s351 = sand.u32 %s37, 1
        %s352 = scalar_lea.sflag [#allocation6], %s351
        %s353 = sand.u32 %s37, 1
        %s354 = smul.addr %s353, 4
        %s355 = scalar_lea.vmem [#allocation5], %s354
        %p356 = pneg %p50
        %p357 = pneg %p47
        %p358 = pneg %p71
        %p359 = pneg %p68
        %p360 = pneg %p92
        %p361 = pneg %p89
        %p362 = pneg %p113
        %p363 = pneg %p110
        %p364 = pneg %p134
        %p365 = pneg %p131
        %p366 = pneg %p155
        %p367 = pneg %p152
        %p368 = pneg %p181
        %p369 = pneg %p178
        %s370 = sand.u32 %s168, 1
        %s371 = scalar_lea.sflag [#allocation7], %s370
        %s372 = sand.u32 %s168, 1
        %s373 = smul.addr %s372, 8
        %s374 = scalar_lea.vmem [#allocation14], %s373
        %p375 = pneg %p202
        %p376 = pneg %p199
        %p377 = pneg %p223
        %p378 = pneg %p220
        %p379 = scmp.eq.s32.totalorder %s29, 0
        // Predicated region
        $region65: #{tpu_custom_call.1} parent=43 // pred_check
          %p380 = pneg %p379
        $region66: #{tpu_custom_call.1} parent=43 // pred_check_branch
          %382 = sbr.rel (%p380) target = $region68
        $region67: #{tpu_custom_call.1} parent=43 // pred_region
          %v383 = vld [vmem:[#allocation11] sm:$0xff]
          %384 = vst [vmem:[#allocation2] sm:$0xff] %v383
          %v385 = vld [vmem:[#allocation13] sm:$0xff]
          %386 = vst [vmem:[#allocation3] sm:$0xff] %v385
          %v387 = vld [vmem:[%s5] sm:$0xf]
          %388 = vst [vmem:[#allocation4] sm:$0xf] %v387
        $region68: #{tpu_custom_call.1} parent=43 // pred_fallthru
          _
        %v389 = vld [vmem:[%s325] sm:$0xf]
        %v390 = vld [vmem:[#allocation4] sm:$0xf]
        %v391 = vld [vmem:[#allocation8] sm:$0xf]
        %v392 = vld [vmem:[#allocation8 + $0x4] sm:$0xf]
        %v393 = vld [vmem:[#allocation8 + $0x8] sm:$0xf]
        %v394 = vld [vmem:[#allocation8 + $0xc] sm:$0xf]
        %v395 = vld [vmem:[#allocation8 + $0x10] sm:$0xf]
        %v396 = vld [vmem:[#allocation8 + $0x14] sm:$0xf]
        %v397 = vld [vmem:[#allocation8 + $0x18] sm:$0xf]
        %v398 = vld [vmem:[#allocation8 + $0x1c] sm:$0xf]
        %v399 = vld [vmem:[#allocation8 + $0x20] sm:$0xf]
        %v400 = vld [vmem:[#allocation8 + $0x24] sm:$0xf]
        %v401 = vld [vmem:[#allocation8 + $0x28] sm:$0xf]
        %v402 = vld [vmem:[#allocation8 + $0x2c] sm:$0xf]
        %v403 = vld [vmem:[#allocation8 + $0x30] sm:$0xf]
        %v404 = vld [vmem:[#allocation8 + $0x34] sm:$0xf]
        %v405 = vld [vmem:[#allocation8 + $0x38] sm:$0xf]
        %v406 = vld [vmem:[#allocation8 + $0x3c] sm:$0xf]
        %v407 = vld [vmem:[#allocation8 + $0x40] sm:$0xf]
        %v408 = vld [vmem:[#allocation8 + $0x44] sm:$0xf]
        %v409 = vld [vmem:[#allocation8 + $0x48] sm:$0xf]
        %v410 = vld [vmem:[#allocation8 + $0x4c] sm:$0xf]
        %v411 = vld [vmem:[#allocation8 + $0x50] sm:$0xf]
        %v412 = vld [vmem:[#allocation8 + $0x54] sm:$0xf]
        %v413 = vld [vmem:[#allocation8 + $0x58] sm:$0xf]
        %v414 = vld [vmem:[#allocation8 + $0x5c] sm:$0xf]
        %v415 = vld [vmem:[#allocation8 + $0x60] sm:$0xf]
        %v416 = vld [vmem:[#allocation8 + $0x64] sm:$0xf]
        %v417 = vld [vmem:[#allocation8 + $0x68] sm:$0xf]
        %v418 = vld [vmem:[#allocation8 + $0x6c] sm:$0xf]
        %v419 = vld [vmem:[#allocation8 + $0x70] sm:$0xf]
        %v420 = vld [vmem:[#allocation8 + $0x74] sm:$0xf]
        %v421 = vld [vmem:[#allocation8 + $0x78] sm:$0xf]
        %v422 = vld [vmem:[#allocation8 + $0x7c] sm:$0xf]
        %v423 = vld [vmem:[#allocation10] sm:$0xff]
        %v456 = vunpack.c.l.b16 %v391
        %v457 = vunpack.c.l.b16 %v392
        %v458 = vunpack.c.l.b16 %v393
        %v459 = vunpack.c.l.b16 %v394
        %v460 = vunpack.c.l.b16 %v395
        %v461 = vunpack.c.l.b16 %v396
        %v462 = vunpack.c.l.b16 %v397
        %v463 = vunpack.c.l.b16 %v398
        %v464 = vunpack.c.l.b16 %v399
        %v465 = vunpack.c.l.b16 %v400
        %v466 = vunpack.c.l.b16 %v401
        %v467 = vunpack.c.l.b16 %v402
        %v468 = vunpack.c.l.b16 %v403
        %v469 = vunpack.c.l.b16 %v404
        %v470 = vunpack.c.l.b16 %v405
        %v471 = vunpack.c.l.b16 %v406
        %v472 = vunpack.c.l.b16 %v407
        %v473 = vunpack.c.l.b16 %v408
        %v474 = vunpack.c.l.b16 %v409
        %v475 = vunpack.c.l.b16 %v410
        %v476 = vunpack.c.l.b16 %v411
        %v477 = vunpack.c.l.b16 %v412
        %v478 = vunpack.c.l.b16 %v413
        %v479 = vunpack.c.l.b16 %v414
        %v480 = vunpack.c.l.b16 %v415
        %v481 = vunpack.c.l.b16 %v416
        %v482 = vunpack.c.l.b16 %v417
        %v483 = vunpack.c.l.b16 %v418
        %v484 = vunpack.c.l.b16 %v419
        %v485 = vunpack.c.l.b16 %v420
        %v486 = vunpack.c.l.b16 %v421
        %v487 = vunpack.c.l.b16 %v422
        %v488 = vpack.c.b16 %v457, %v456
        %v489 = vpack.c.b16 %v459, %v458
        %v490 = vpack.c.b16 %v461, %v460
        %v491 = vpack.c.b16 %v463, %v462
        %v492 = vpack.c.b16 %v465, %v464
        %v493 = vpack.c.b16 %v467, %v466
        %v494 = vpack.c.b16 %v469, %v468
        %v495 = vpack.c.b16 %v471, %v470
        %v496 = vpack.c.b16 %v473, %v472
        %v497 = vpack.c.b16 %v475, %v474
        %v498 = vpack.c.b16 %v477, %v476
        %v499 = vpack.c.b16 %v479, %v478
        %v500 = vpack.c.b16 %v481, %v480
        %v501 = vpack.c.b16 %v483, %v482
        %v502 = vpack.c.b16 %v485, %v484
        %v503 = vpack.c.b16 %v487, %v486
        %520 = vmatpush.bf16.msra.mxu0 %v495
        %521 = vmatpush.bf16.msra.mxu0 %v494
        %522 = vmatpush.bf16.msra.mxu0 %v493
        %523 = vmatpush.bf16.msra.mxu0 %v492
        %524 = vmatpush.bf16.msra.mxu0 %v491
        %525 = vmatpush.bf16.msra.mxu0 %v490
        %526 = vmatpush.bf16.msra.mxu0 %v489
        %527 = vmatpush.bf16.msra.mxu0 %v488
        %528 = vmatmul.bf16.gmra.mxu0 %v389
        %v529 = vpop.f32.mrf.mxu0
        %v530 = vadd.f32 %v423, %v529
        %v531 = vpop.f32.mrf.mxu0
        %532 = vdwg.mxu0
        %533 = vmatpush.bf16.msra.mxu0 %v503
        %534 = vmatpush.bf16.msra.mxu0 %v502
        %535 = vmatpush.bf16.msra.mxu0 %v501
        %536 = vmatpush.bf16.msra.mxu0 %v500
        %537 = vmatpush.bf16.msra.mxu0 %v499
        %538 = vmatpush.bf16.msra.mxu0 %v498
        %539 = vmatpush.bf16.msra.mxu0 %v497
        %540 = vmatpush.bf16.msra.mxu0 %v496
        %541 = vmatmul.bf16.gmra.mxu0 %v390
        %v542 = vpop.f32.mrf.mxu0
        %v543 = vadd.f32 %v530, %v542
        %v544 = vpop.f32.mrf.mxu0
        %545 = vdwg.mxu0
        %v546 = vld [vmem:[#allocation2] sm:$0xff]
        %v547 = vmul.f32 %v546, 0.9
        %v548 = vadd.f32 %v547, %v543
        %v549 = vld [vmem:[#allocation3] sm:$0xff]
        %v550 = vmul.f32 %v549, 0.85
        %v551 = vadd.f32 %v550, %v548
        %v552 = vsub.f32 %v551, 1.0
        %vm553 = vcmp.gt.f32.partialorder %v552, 0.0
        %v554 = vsel %vm553, 1.0, 0.0
        %555 = vst [vmem:[%s374] sm:$0xff] %v554
        %556 = vst [vmem:[#allocation2] sm:$0xff] %v548
        %v557 = vsel %vm553, 0.0, %v551
        %558 = vst [vmem:[#allocation3] sm:$0xff] %v557
        %v559 = vpack.c.bf16 %v554, %v554
        %560 = vst [vmem:[#allocation4] sm:$0xf] %v559
        %p561 = scmp.eq.s32.totalorder %s29, 7
        // Predicated region
        $region69: #{tpu_custom_call.1} parent=43 // pred_check
          %p562 = pneg %p561
        $region70: #{tpu_custom_call.1} parent=43 // pred_check_branch
          %564 = sbr.rel (%p562) target = $region72
        $region71: #{tpu_custom_call.1} parent=43 // pred_region
          %v565 = vld [vmem:[#allocation2] sm:$0xff]
          %566 = vst [vmem:[#allocation15] sm:$0xff] %v565
          %v567 = vld [vmem:[#allocation3] sm:$0xff]
          %568 = vst [vmem:[#allocation17] sm:$0xff] %v567
        $region72: #{tpu_custom_call.1} parent=43 // pred_fallthru
          _
        %s569 = sand.u32 %s168, 1
        %s570 = scalar_lea.sflag [#allocation7], %s569
        %s571 = sand.u32 %s168, 1
        %s572 = smul.addr %s571, 8
        %s573 = scalar_lea.vmem [#allocation14], %s572
        // Predicated region
        $region73: #{tpu_custom_call.1} parent=43 // pred_check
          %p574 = pneg %p178
        $region74: #{tpu_custom_call.1} parent=43 // pred_check_branch
          %576 = sbr.rel (%p574) target = $region76
        $region75: #{tpu_custom_call.1} parent=43 // pred_region
          %578 = vsyncadd %s570, 0
          %s579 = smul.addr %s29, 8
          %s580 = scalar_lea.hbm %s6, %s579
          %s582 = sshll.u32 %s573, 4
          %s583 = int_to_ptr.vmem [resolvable:$true] %s582
          %s584 = sshll.u32 %s580, 4
          %s585 = int_to_ptr.hbm [resolvable:$true] %s584
          %587 = dma.vmem_to_hbm [thread:$0]  %s583, 128, %s585, %s570
        $region76: #{tpu_custom_call.1} parent=43 // pred_fallthru
          _
        // Predicated region
        $region77: #{tpu_custom_call.1} parent=43 // pred_check
          %p588 = pneg %p199
        $region78: #{tpu_custom_call.1} parent=43 // pred_check_branch
          %590 = sbr.rel (%p588) target = $region80
        $region79: #{tpu_custom_call.1} parent=43 // pred_region
          %592 = vsyncadd [#allocation16], 0
          %s594 = sshll.u32 [#allocation15], 4
          %s595 = int_to_ptr.vmem [resolvable:$true] %s594
          %s596 = sshll.u32 %s7, 4
          %s597 = int_to_ptr.hbm [resolvable:$true] %s596
          %599 = dma.vmem_to_hbm [thread:$0]  %s595, 128, %s597, [#allocation16]
        $region80: #{tpu_custom_call.1} parent=43 // pred_fallthru
          _
        // Predicated region
        $region81: #{tpu_custom_call.1} parent=43 // pred_check
          %p600 = pneg %p220
        $region82: #{tpu_custom_call.1} parent=43 // pred_check_branch
          %602 = sbr.rel (%p600) target = $region84
        $region83: #{tpu_custom_call.1} parent=43 // pred_region
          %604 = vsyncadd [#allocation16], 0
          %s606 = sshll.u32 [#allocation17], 4
          %s607 = int_to_ptr.vmem [resolvable:$true] %s606
          %s608 = sshll.u32 %s8, 4
          %s609 = int_to_ptr.hbm [resolvable:$true] %s608
          %611 = dma.vmem_to_hbm [thread:$0]  %s607, 128, %s609, [#allocation16]
        $region84: #{tpu_custom_call.1} parent=43 // pred_fallthru
          _
        // Predicated region
        $region85: #{tpu_custom_call.1} parent=43 // pred_check
          %p612 = pneg %p199
        $region86: #{tpu_custom_call.1} parent=43 // pred_check_branch
          %614 = sbr.rel (%p612) target = $region88
        $region87: #{tpu_custom_call.1} parent=43 // pred_region
          %616 = dma.done [#allocation16], 128
        $region88: #{tpu_custom_call.1} parent=43 // pred_fallthru
          _
        // Predicated region
        $region89: #{tpu_custom_call.1} parent=43 // pred_check
          %p617 = pneg %p220
        $region90: #{tpu_custom_call.1} parent=43 // pred_check_branch
          %619 = sbr.rel (%p617) target = $region92
        $region91: #{tpu_custom_call.1} parent=43 // pred_region
          %621 = dma.done [#allocation16], 128
        $region92: #{tpu_custom_call.1} parent=43 // pred_fallthru
          _
      $region44: #{tpu_custom_call.1} parent=5 // pred_fallthru
        _
      %p622 = scmp.le.s32.totalorder 2, %s24
      // Predicated region
      $region93: #{tpu_custom_call.1} parent=5 // pred_check
        %p623 = pneg %p622
      $region94: #{tpu_custom_call.1} parent=5 // pred_check_branch
        %625 = sbr.rel (%p623) target = $region96
      $region95: #{tpu_custom_call.1} parent=5 // pred_region
        %s626 = ssub.s32 %s24, 2
        // Predicated region
        $region97: #{tpu_custom_call.1} parent=95 // pred_check
          %p627 = pneg %p184
        $region98: #{tpu_custom_call.1} parent=95 // pred_check_branch
          %629 = sbr.rel (%p627) target = $region100
        $region99: #{tpu_custom_call.1} parent=95 // pred_region
          %s630 = sand.u32 %s169, 1
          %s631 = scalar_lea.sflag [#allocation7], %s630
          %s632 = sand.u32 %s169, 1
          %s633 = smul.addr %s632, 8
          %s634 = scalar_lea.vmem [#allocation14], %s633
          %636 = dma.done %s631, 128
        $region100: #{tpu_custom_call.1} parent=95 // pred_fallthru
          _
      $region96: #{tpu_custom_call.1} parent=5 // pred_fallthru
        _
    $region6: #{tpu_custom_call.1} parent=1 // loop_footer
      %s28 = sadd.s32 1, %s24
    $region7: #{tpu_custom_call.1} parent=1 // loop_footer_branch
      %23 = sbr.rel target = $region3
    $region8: #{tpu_custom_call.1} parent=1 // loop_exit
      _
    %637 = vsyncpa [#allocation6], 1
    %s638 = scalar_lea.sflag [#allocation6], 1
    %639 = vsyncpa %s638, 1
    %640 = vsyncpa [#allocation9], 1
    %641 = vsyncpa [#allocation12], 1
    %642 = vsyncpa [#allocation7], 1
    %s643 = scalar_lea.sflag [#allocation7], 1
    %644 = vsyncpa %s643, 1
    %645 = vsyncpa [#allocation16], 1

</llo_original>
